<compile_context>
chip_gen: v5e
topology: v5e:2x2
jax: 0.10.0
libtpu: 0.0.40
codegen_flags: <defaults>
</compile_context>

<pallas_src>
import functools

import numpy as np

import jax
import jax.numpy as jnp
from jax import lax
from jax.experimental import pallas as pl
from jax.experimental.pallas import tpu as pltpu

_BIG = 3.0e38  # Python float "+inf" sentinel (safe for min-reductions)


def _round_up(v, m):
    return ((v + m - 1) // m) * m


def _neighbour_loss_kernel(xr_ref, xc_ref, tcol_ref, trow_ref, sqrow_ref,
                           out_ref, *, k, margin, n_valid):
    tm = xr_ref.shape[0]
    n_pad = xc_ref.shape[0]

    xr = xr_ref[...]                                   # (tm, d)  f32 row block
    xc = xc_ref[...]                                   # (n_pad, d) full X

    # ---- Gram block on the MXU: contract feature dim of both operands ----
    g = lax.dot_general(xr, xc,
                        dimension_numbers=(((1,), (1,)), ((), ())),
                        preferred_element_type=jnp.float32)      # (tm, n_pad)

    # ---- squared euclidean distances (norms: VPU row-sum + wrapper row) ----
    sq_r = jnp.sum(xr * xr, axis=1, keepdims=True)               # (tm, 1)
    sq_c = sqrow_ref[...]                                        # (1, n_pad)
    d2 = sq_r + sq_c - 2.0 * g
    dist = jnp.sqrt(jnp.maximum(d2, 1e-12))                      # (tm, n_pad)

    # ---- masks: same-label off-diagonal positives / diff-label negatives ----
    row_base = pl.program_id(0) * tm
    rid = row_base + lax.broadcasted_iota(jnp.int32, (tm, 1), 0)   # global row
    cid = lax.broadcasted_iota(jnp.int32, (tm, n_pad), 1)
    eye = cid == rid
    col_valid = cid < n_valid
    row_valid = rid < n_valid

    same = tcol_ref[...] == trow_ref[...]                        # (tm, n_pad)
    pos_mask = same & jnp.logical_not(eye) & col_valid
    neg_mask = jnp.logical_not(same) & col_valid

    # ---- k smallest positive distances per row (k static; k==1 fast path) ----
    pos_vals = jnp.where(pos_mask, dist, _BIG)
    row_min = jnp.min(pos_vals, axis=1, keepdims=True)           # (tm, 1)
    pos_sum = row_min
    last_min = row_min
    for _ in range(k - 1):
        # mask out the first occurrence of the current minimum, then re-min
        idx = jnp.min(jnp.where(pos_vals == last_min, cid, n_pad),
                      axis=1, keepdims=True)
        pos_vals = jnp.where(cid == idx, _BIG, pos_vals)
        row_min = jnp.min(pos_vals, axis=1, keepdims=True)
        pos_sum = pos_sum + row_min
        last_min = row_min

    # ---- negatives closer than (k-th positive + margin) ----
    thresh = last_min + margin
    neg_sel = neg_mask & (dist < thresh)
    nf = neg_sel.astype(jnp.float32)
    cnt = jnp.sum(nf, axis=1, keepdims=True)                     # (tm, 1)
    neg_sum = jnp.sum(dist * nf, axis=1, keepdims=True)
    neg_mean = neg_sum * pl.reciprocal(jnp.maximum(cnt, 1.0), approx=True)
    pos_mean = pos_sum * (1.0 / float(k))

    # rows with no selected negatives contribute 0 (PyTorch `continue`);
    # padded rows and degenerate rows without k positives are also zeroed.
    has_pos = last_min < 1.0e37
    contributes = (cnt > 0.0) & row_valid & has_pos
    out_ref[...] = jnp.where(contributes, pos_mean - neg_mean + margin, 0.0)


def neighbour_loss(inputs, targets, *, k=1, margin=0.1):
    """Pallas implementation of NeighbourLoss.forward (balanced batches)."""
    n, d = inputs.shape
    x = inputs.astype(jnp.float32)

    # ---- lane-aligned padding + row tile selection -------------------------
    n_pad = _round_up(max(n, 1), 128)       # last dim of the distance slab
    tm = 128
    budget = 40 * 1024 * 1024               # working-set budget per grid step
    while tm > 8 and 10 * tm * n_pad * 4 > budget:
        tm //= 2                            # tm in {8,...,128} always divides 128
    grid = n_pad // tm

    pad_n = n_pad - n
    x_pad = jnp.pad(x, ((0, pad_n), (0, 0)))
    t = targets.astype(jnp.int32)
    t_pad = jnp.pad(t, (0, pad_n))          # padded labels masked via col index
    tcol = t_pad.reshape(n_pad, 1)
    trow = t_pad.reshape(1, n_pad)
    sqrow = jnp.sum(x_pad * x_pad, axis=1).reshape(1, n_pad)

    # ---- VMEM budget: ~10 live (tm, n_pad) slabs + resident X (lane-padded) --
    d_est = _round_up(d, 128)
    est = 10 * tm * n_pad * 4 + 3 * n_pad * d_est * 4 + (2 << 20)
    vmem_limit = int(min(max(est, 32 * 1024 * 1024), 48 * 1024 * 1024))

    kernel = functools.partial(_neighbour_loss_kernel, k=int(k),
                               margin=float(margin), n_valid=int(n))

    row_loss = pl.pallas_call(
        kernel,
        out_shape=jax.ShapeDtypeStruct((n_pad, 1), jnp.float32),
        grid_spec=pltpu.PrefetchScalarGridSpec(
            num_scalar_prefetch=0,
            grid=(grid,),
            in_specs=[
                pl.BlockSpec((tm, d), lambda i: (i, 0)),      # X row block
                pl.BlockSpec((n_pad, d), lambda i: (0, 0)),   # full X (resident)
                pl.BlockSpec((tm, 1), lambda i: (i, 0)),      # labels column blk
                pl.BlockSpec((1, n_pad), lambda i: (0, 0)),   # labels row
                pl.BlockSpec((1, n_pad), lambda i: (0, 0)),   # squared norms row
            ],
            out_specs=pl.BlockSpec((tm, 1), lambda i: (i, 0)),
        ),
        compiler_params=pltpu.CompilerParams(
            dimension_semantics=("parallel",),
            vmem_limit_bytes=vmem_limit,
        ),
    )(x_pad, x_pad, tcol, trow, sqrow)

    return jnp.sum(row_loss) / jnp.float32(n)


def _numpy_reference(x, t, k, margin):
    """Direct transcription of the PyTorch forward (balanced batch assumed)."""
    n = x.shape[0]
    sq = (x ** 2).sum(1)
    d2 = sq[:, None] + sq[None, :] - 2.0 * (x @ x.T)
    dist = np.sqrt(np.clip(d2, 1e-12, None))
    losses = []
    for i in range(n):
        pos = np.sort(dist[i][(t == t[i]) & (np.arange(n) != i)])
        neg = np.sort(dist[i][t != t[i]])
        pos_k = pos[:k]
        sel = neg[neg < pos_k[-1] + margin]
        if len(sel) > 0:
            losses.append(pos_k.mean() - sel.mean() + margin)
    return (float(sum(losses)) / n) if losses else 0.0


if __name__ == "__main__":
    key = jax.random.PRNGKey(0)
    n, d = 8, 32                       # 8 samples, hidden=32
    x = jax.random.normal(key, (n, d), dtype=jnp.float32)
    targets = jnp.array([0, 0, 1, 1, 2, 2, 3, 3], dtype=jnp.int32)  # 4 classes x 2

    loss = neighbour_loss(x, targets, k=1, margin=0.1)
    loss = jax.block_until_ready(loss)

    ref = _numpy_reference(np.asarray(x, np.float32), np.asarray(targets), 1, 0.1)
    assert abs(float(loss) - ref) < 1e-3, (float(loss), ref)
    print("KERNEL_OK")
</pallas_src>

<mosaic_0001>
module attributes {stable_mosaic.version = 11 : i64} {
  func.func @_neighbour_loss_kernel(%arg0: i32, %arg1: memref<128x32xf32, #tpu.memory_space<vmem>>, %arg2: memref<128x32xf32, #tpu.memory_space<vmem>>, %arg3: memref<128x1xi32, #tpu.memory_space<vmem>>, %arg4: memref<1x128xi32, #tpu.memory_space<vmem>>, %arg5: memref<1x128xf32, #tpu.memory_space<vmem>>, %arg6: memref<128x1xf32, #tpu.memory_space<vmem>>) attributes {dimension_semantics = [#tpu.dimension_semantics<parallel>], iteration_bounds = array<i64: 1>, scalar_prefetch = 0 : i64, scratch_operands = 0 : i64, tpu.core_type = #tpu.core_type<tc>, window_params = [{transform_indices = @transform_0, window_bounds = array<i64: 128, 32>}, {pipeline_mode = #tpu.pipeline_mode<synchronous>, transform_indices = @transform_1, window_bounds = array<i64: 128, 32>}, {transform_indices = @transform_2, window_bounds = array<i64: 128, 1>}, {pipeline_mode = #tpu.pipeline_mode<synchronous>, transform_indices = @transform_3, window_bounds = array<i64: 1, 128>}, {pipeline_mode = #tpu.pipeline_mode<synchronous>, transform_indices = @transform_4, window_bounds = array<i64: 1, 128>}, {transform_indices = @transform_5, window_bounds = array<i64: 128, 1>}]} {
    %c0 = arith.constant 0 : index
    %c0_0 = arith.constant 0 : index
    %0 = vector.load %arg1[%c0, %c0_0] : memref<128x32xf32, #tpu.memory_space<vmem>>, vector<128x32xf32>
    %c0_1 = arith.constant 0 : index
    %c0_2 = arith.constant 0 : index
    %1 = vector.load %arg2[%c0_1, %c0_2] : memref<128x32xf32, #tpu.memory_space<vmem>>, vector<128x32xf32>
    %cst = arith.constant dense<0.000000e+00> : vector<128x128xf32>
    %2 = tpu.matmul %0, %1, %cst {dimension_numbers = #tpu.dot_dimension_numbers<[1], [1], [0], [0], [0, 0, 1, 0], [], []>} : vector<128x32xf32>, vector<128x32xf32>, vector<128x128xf32> -> vector<128x128xf32>
    %3 = arith.mulf %0, %0 : vector<128x32xf32>
    %cst_3 = arith.constant dense<0.000000e+00> : vector<128xf32>
    %4 = vector.multi_reduction <add>, %3, %cst_3 [1] : vector<128x32xf32> to vector<128xf32>
    %5 = vector.shape_cast %4 : vector<128xf32> to vector<128x1xf32>
    %c0_4 = arith.constant 0 : index
    %c0_5 = arith.constant 0 : index
    %6 = vector.load %arg5[%c0_4, %c0_5] : memref<1x128xf32, #tpu.memory_space<vmem>>, vector<1x128xf32>
    %7 = vector.broadcast %5 : vector<128x1xf32> to vector<128x128xf32>
    %8 = vector.broadcast %6 : vector<1x128xf32> to vector<128x128xf32>
    %9 = arith.addf %7, %8 : vector<128x128xf32>
    %cst_6 = arith.constant 2.000000e+00 : f32
    %10 = vector.broadcast %cst_6 : f32 to vector<128x128xf32>
    %11 = arith.mulf %10, %2 : vector<128x128xf32>
    %12 = arith.subf %9, %11 : vector<128x128xf32>
    %cst_7 = arith.constant 9.99999996E-13 : f32
    %13 = vector.broadcast %cst_7 : f32 to vector<128x128xf32>
    %14 = arith.maximumf %12, %13 : vector<128x128xf32>
    %15 = math.sqrt %14 : vector<128x128xf32>
    %c128_i32 = arith.constant 128 : i32
    %16 = arith.muli %arg0, %c128_i32 : i32
    %17 = tpu.iota {dimensions = array<i32: 0>} : vector<128x1xi32>
    %18 = vector.broadcast %16 : i32 to vector<128x1xi32>
    %19 = arith.addi %18, %17 : vector<128x1xi32>
    %20 = tpu.iota {dimensions = array<i32: 1>} : vector<128x128xi32>
    %21 = vector.broadcast %19 : vector<128x1xi32> to vector<128x128xi32>
    %22 = arith.cmpi eq, %20, %21 : vector<128x128xi32>
    %c8_i32 = arith.constant 8 : i32
    %23 = vector.broadcast %c8_i32 : i32 to vector<128x128xi32>
    %24 = arith.cmpi slt, %20, %23 : vector<128x128xi32>
    %c8_i32_8 = arith.constant 8 : i32
    %25 = vector.broadcast %c8_i32_8 : i32 to vector<128x1xi32>
    %26 = arith.cmpi slt, %19, %25 : vector<128x1xi32>
    %c0_9 = arith.constant 0 : index
    %c0_10 = arith.constant 0 : index
    %27 = vector.load %arg3[%c0_9, %c0_10] : memref<128x1xi32, #tpu.memory_space<vmem>>, vector<128x1xi32>
    %c0_11 = arith.constant 0 : index
    %c0_12 = arith.constant 0 : index
    %28 = vector.load %arg4[%c0_11, %c0_12] : memref<1x128xi32, #tpu.memory_space<vmem>>, vector<1x128xi32>
    %29 = vector.broadcast %27 : vector<128x1xi32> to vector<128x128xi32>
    %30 = vector.broadcast %28 : vector<1x128xi32> to vector<128x128xi32>
    %31 = arith.cmpi eq, %29, %30 : vector<128x128xi32>
    %cst_13 = arith.constant dense<true> : vector<128x128xi1>
    %32 = arith.xori %22, %cst_13 : vector<128x128xi1>
    %33 = arith.andi %31, %32 : vector<128x128xi1>
    %34 = arith.andi %33, %24 : vector<128x128xi1>
    %cst_14 = arith.constant dense<true> : vector<128x128xi1>
    %35 = arith.xori %31, %cst_14 : vector<128x128xi1>
    %36 = arith.andi %35, %24 : vector<128x128xi1>
    %cst_15 = arith.constant 3.000000e+38 : f32
    %37 = vector.broadcast %cst_15 : f32 to vector<128x128xf32>
    %38 = arith.select %34, %15, %37 : vector<128x128xi1>, vector<128x128xf32>
    %cst_16 = arith.constant dense<0x7F800000> : vector<128xf32>
    %39 = vector.multi_reduction <minimumf>, %38, %cst_16 [1] : vector<128x128xf32> to vector<128xf32>
    %40 = vector.shape_cast %39 : vector<128xf32> to vector<128x1xf32>
    %cst_17 = arith.constant 1.000000e-01 : f32
    %41 = vector.broadcast %cst_17 : f32 to vector<128x1xf32>
    %42 = arith.addf %40, %41 : vector<128x1xf32>
    %43 = vector.broadcast %42 : vector<128x1xf32> to vector<128x128xf32>
    %44 = arith.cmpf olt, %15, %43 : vector<128x128xf32>
    %45 = arith.andi %36, %44 : vector<128x128xi1>
    %46 = arith.extui %45 : vector<128x128xi1> to vector<128x128xi32>
    %47 = arith.sitofp %46 : vector<128x128xi32> to vector<128x128xf32>
    %cst_18 = arith.constant dense<0.000000e+00> : vector<128xf32>
    %48 = vector.multi_reduction <add>, %47, %cst_18 [1] : vector<128x128xf32> to vector<128xf32>
    %49 = vector.shape_cast %48 : vector<128xf32> to vector<128x1xf32>
    %50 = arith.mulf %15, %47 : vector<128x128xf32>
    %cst_19 = arith.constant dense<0.000000e+00> : vector<128xf32>
    %51 = vector.multi_reduction <add>, %50, %cst_19 [1] : vector<128x128xf32> to vector<128xf32>
    %52 = vector.shape_cast %51 : vector<128xf32> to vector<128x1xf32>
    %cst_20 = arith.constant 1.000000e+00 : f32
    %53 = vector.broadcast %cst_20 : f32 to vector<128x1xf32>
    %54 = arith.maximumf %49, %53 : vector<128x1xf32>
    %55 = tpu.reciprocal %54 {approx = true} : vector<128x1xf32> -> vector<128x1xf32>
    %56 = arith.mulf %52, %55 : vector<128x1xf32>
    %cst_21 = arith.constant 1.000000e+00 : f32
    %57 = vector.broadcast %cst_21 : f32 to vector<128x1xf32>
    %58 = arith.mulf %40, %57 : vector<128x1xf32>
    %cst_22 = arith.constant 9.99999993E+36 : f32
    %59 = vector.broadcast %cst_22 : f32 to vector<128x1xf32>
    %60 = arith.cmpf olt, %40, %59 : vector<128x1xf32>
    %cst_23 = arith.constant 0.000000e+00 : f32
    %61 = vector.broadcast %cst_23 : f32 to vector<128x1xf32>
    %62 = arith.cmpf ogt, %49, %61 : vector<128x1xf32>
    %63 = arith.andi %62, %26 : vector<128x1xi1>
    %64 = arith.andi %63, %60 : vector<128x1xi1>
    %65 = arith.subf %58, %56 : vector<128x1xf32>
    %cst_24 = arith.constant 1.000000e-01 : f32
    %66 = vector.broadcast %cst_24 : f32 to vector<128x1xf32>
    %67 = arith.addf %65, %66 : vector<128x1xf32>
    %cst_25 = arith.constant 0.000000e+00 : f32
    %68 = vector.broadcast %cst_25 : f32 to vector<128x1xf32>
    %69 = arith.select %64, %67, %68 : vector<128x1xi1>, vector<128x1xf32>
    %c0_26 = arith.constant 0 : index
    %c0_27 = arith.constant 0 : index
    %70 = vector.load %arg6[%c0_26, %c0_27] : memref<128x1xf32, #tpu.memory_space<vmem>>, vector<128x1xf32>
    tpu.vector_store %arg6[%c0_26, %c0_27], %69 {strides = array<i32>} : memref<128x1xf32, #tpu.memory_space<vmem>>, vector<128x1xf32>,
    return
  }
  func.func @transform_0(%arg0: i32) -> (i32, i32) {
    %c0_i32 = arith.constant 0 : i32
    %c0_i32_0 = arith.constant 0 : i32
    return %arg0, %c0_i32 : i32, i32
  }
  func.func @transform_1(%arg0: i32) -> (i32, i32) {
    %c0_i32 = arith.constant 0 : i32
    %c0_i32_0 = arith.constant 0 : i32
    %c0_i32_1 = arith.constant 0 : i32
    return %c0_i32, %c0_i32_0 : i32, i32
  }
  func.func @transform_2(%arg0: i32) -> (i32, i32) {
    %c0_i32 = arith.constant 0 : i32
    %c0_i32_0 = arith.constant 0 : i32
    return %arg0, %c0_i32 : i32, i32
  }
  func.func @transform_3(%arg0: i32) -> (i32, i32) {
    %c0_i32 = arith.constant 0 : i32
    %c0_i32_0 = arith.constant 0 : i32
    %c0_i32_1 = arith.constant 0 : i32
    return %c0_i32, %c0_i32_0 : i32, i32
  }
  func.func @transform_4(%arg0: i32) -> (i32, i32) {
    %c0_i32 = arith.constant 0 : i32
    %c0_i32_0 = arith.constant 0 : i32
    %c0_i32_1 = arith.constant 0 : i32
    return %c0_i32, %c0_i32_0 : i32, i32
  }
  func.func @transform_5(%arg0: i32) -> (i32, i32) {
    %c0_i32 = arith.constant 0 : i32
    %c0_i32_0 = arith.constant 0 : i32
    return %arg0, %c0_i32 : i32, i32
  }
}

</mosaic_0001>

<llo_original>
// kernel: tpu_custom_call.1
$region0: #{tpu_custom_call.1}
  #allocation0 [shape = 'u32[]', space=smem, size = 0x4, offset = 0x4, fixed_abs, tag = 'smem constant byte address 0x4 - core index']
  #allocation1 [shape = 'u32[72,128]{1,0:T(1,128)}', space=vmem, size = 0x9000, scoped, tag = 'internal scratch']
  %s0 = inlined_call_operand.vmem [shape: f32[128,32], index: 0, kind: input, shape index: {}]
  %s1 = inlined_call_operand.vmem [shape: f32[128,32], index: 1, kind: input, shape index: {}]
  %s2 = inlined_call_operand.vmem [shape: s32[128,1], index: 2, kind: input, shape index: {}]
  %s3 = inlined_call_operand.vmem [shape: s32[1,128], index: 3, kind: input, shape index: {}]
  %s4 = inlined_call_operand.vmem [shape: f32[1,128], index: 4, kind: input, shape index: {}]
  %s5 = inlined_call_operand.vmem [shape: f32[128,1], index: 5, kind: output, shape index: {}]
  %s6 = sld [smem:[#allocation0]]
  $region30: #{tpu_custom_call.1} parent=0
    _
  %s8 = ssub.s32 1, %s6
  %s9 = scalar_select 0, %s8, %s6
  // Predicated region
  $region2: #{tpu_custom_call.1} parent=0 // pred_check
    _
  $region3: #{tpu_custom_call.1} parent=0 // pred_check_branch
    %11 = sbr.rel (0) target = $region5
  $region4: #{tpu_custom_call.1} parent=0 // pred_region
    _
  $region5: #{tpu_custom_call.1} parent=0 // pred_fallthru
    _
  // Predicated region
  $region6: #{tpu_custom_call.1} parent=0 // pred_check
    _
  $region7: #{tpu_custom_call.1} parent=0 // pred_check_branch
    %13 = sbr.rel (0) target = $region9
  $region8: #{tpu_custom_call.1} parent=0 // pred_region
    _
  $region9: #{tpu_custom_call.1} parent=0 // pred_fallthru
    _
  // Predicated region
  $region10: #{tpu_custom_call.1} parent=0 // pred_check
    _
  $region11: #{tpu_custom_call.1} parent=0 // pred_check_branch
    %15 = sbr.rel (0) target = $region13
  $region12: #{tpu_custom_call.1} parent=0 // pred_region
    _
  $region13: #{tpu_custom_call.1} parent=0 // pred_fallthru
    _
  // Predicated region
  $region14: #{tpu_custom_call.1} parent=0 // pred_check
    _
  $region15: #{tpu_custom_call.1} parent=0 // pred_check_branch
    %17 = sbr.rel (0) target = $region17
  $region16: #{tpu_custom_call.1} parent=0 // pred_region
    _
  $region17: #{tpu_custom_call.1} parent=0 // pred_fallthru
    _
  // Predicated region
  $region18: #{tpu_custom_call.1} parent=0 // pred_check
    _
  $region19: #{tpu_custom_call.1} parent=0 // pred_check_branch
    %19 = sbr.rel (0) target = $region21
  $region20: #{tpu_custom_call.1} parent=0 // pred_region
    _
  $region21: #{tpu_custom_call.1} parent=0 // pred_fallthru
    _
  %v20 = vld [vmem:[%s0] sm:$0xff]
  %v21 = vld [vmem:[%s0 + $0x8] sm:$0xff]
  %v22 = vld [vmem:[%s0 + $0x10] sm:$0xff]
  %v23 = vld [vmem:[%s0 + $0x18] sm:$0xff]
  %v24 = vld [vmem:[%s0 + $0x20] sm:$0xff]
  %v25 = vld [vmem:[%s0 + $0x28] sm:$0xff]
  %v26 = vld [vmem:[%s0 + $0x30] sm:$0xff]
  %v27 = vld [vmem:[%s0 + $0x38] sm:$0xff]
  %v28 = vld [vmem:[%s0 + $0x40] sm:$0xff]
  %v29 = vld [vmem:[%s0 + $0x48] sm:$0xff]
  %v30 = vld [vmem:[%s0 + $0x50] sm:$0xff]
  %v31 = vld [vmem:[%s0 + $0x58] sm:$0xff]
  %v32 = vld [vmem:[%s0 + $0x60] sm:$0xff]
  %v33 = vld [vmem:[%s0 + $0x68] sm:$0xff]
  %v34 = vld [vmem:[%s0 + $0x70] sm:$0xff]
  %v35 = vld [vmem:[%s0 + $0x78] sm:$0xff]
  %v36 = vld [vmem:[%s1] sm:$0xff]
  %v37 = vld [vmem:[%s1 + $0x8] sm:$0xff]
  %v38 = vld [vmem:[%s1 + $0x10] sm:$0xff]
  %v39 = vld [vmem:[%s1 + $0x18] sm:$0xff]
  %v40 = vld [vmem:[%s1 + $0x20] sm:$0xff]
  %v41 = vld [vmem:[%s1 + $0x28] sm:$0xff]
  %v42 = vld [vmem:[%s1 + $0x30] sm:$0xff]
  %v43 = vld [vmem:[%s1 + $0x38] sm:$0xff]
  %v44 = vld [vmem:[%s1 + $0x40] sm:$0xff]
  %v45 = vld [vmem:[%s1 + $0x48] sm:$0xff]
  %v46 = vld [vmem:[%s1 + $0x50] sm:$0xff]
  %v47 = vld [vmem:[%s1 + $0x58] sm:$0xff]
  %v48 = vld [vmem:[%s1 + $0x60] sm:$0xff]
  %v49 = vld [vmem:[%s1 + $0x68] sm:$0xff]
  %v50 = vld [vmem:[%s1 + $0x70] sm:$0xff]
  %v51 = vld [vmem:[%s1 + $0x78] sm:$0xff]
  %vm52 = vcmask 261120
  %v54 = vsel %vm52, %v20, 0
  %v57 = vsel %vm52, %v21, 0
  %v60 = vsel %vm52, %v22, 0
  %v63 = vsel %vm52, %v23, 0
  %v66 = vsel %vm52, %v24, 0
  %v69 = vsel %vm52, %v25, 0
  %v72 = vsel %vm52, %v26, 0
  %v75 = vsel %vm52, %v27, 0
  %v78 = vsel %vm52, %v28, 0
  %v81 = vsel %vm52, %v29, 0
  %v84 = vsel %vm52, %v30, 0
  %v87 = vsel %vm52, %v31, 0
  %v90 = vsel %vm52, %v32, 0
  %v93 = vsel %vm52, %v33, 0
  %v96 = vsel %vm52, %v34, 0
  %v99 = vsel %vm52, %v35, 0
  %v102 = vsel %vm52, %v36, 0
  %v105 = vsel %vm52, %v37, 0
  %v108 = vsel %vm52, %v38, 0
  %v111 = vsel %vm52, %v39, 0
  %v114 = vsel %vm52, %v40, 0
  %v117 = vsel %vm52, %v41, 0
  %v120 = vsel %vm52, %v42, 0
  %v123 = vsel %vm52, %v43, 0
  %v126 = vsel %vm52, %v44, 0
  %v129 = vsel %vm52, %v45, 0
  %v132 = vsel %vm52, %v46, 0
  %v135 = vsel %vm52, %v47, 0
  %v138 = vsel %vm52, %v48, 0
  %v141 = vsel %vm52, %v49, 0
  %v144 = vsel %vm52, %v50, 0
  %v147 = vsel %vm52, %v51, 0
  %149 = vmatpush.xpose.msra.mxu0 %v147
  %150 = vmatpush.xpose.msra.mxu0 %v144
  %151 = vmatpush.xpose.msra.mxu0 %v141
  %152 = vmatpush.xpose.msra.mxu0 %v138
  %153 = vmatpush.xpose.msra.mxu0 %v135
  %154 = vmatpush.xpose.msra.mxu0 %v132
  %155 = vmatpush.xpose.msra.mxu0 %v129
  %156 = vmatpush.xpose.msra.mxu0 %v126
  %157 = vmatpush.xpose.msra.mxu0 %v123
  %158 = vmatpush.xpose.msra.mxu0 %v120
  %159 = vmatpush.xpose.msra.mxu0 %v117
  %160 = vmatpush.xpose.msra.mxu0 %v114
  %161 = vmatpush.xpose.msra.mxu0 %v111
  %162 = vmatpush.xpose.msra.mxu0 %v108
  %163 = vmatpush.xpose.msra.mxu0 %v105
  %164 = vmatpush.xpose.msra.mxu0 %v102
  %165 = vmatmul.f32.gmra.mxu0 %v54
  %v166 = vpop.f32.mrf.mxu0
  %v167 = vadd.f32 0.0, %v166
  %168 = vmatmul.f32.gmra.mxu0 %v57
  %v169 = vpop.f32.mrf.mxu0
  %v170 = vadd.f32 0.0, %v169
  %171 = vmatmul.f32.gmra.mxu0 %v60
  %v172 = vpop.f32.mrf.mxu0
  %v173 = vadd.f32 0.0, %v172
  %174 = vmatmul.f32.gmra.mxu0 %v63
  %v175 = vpop.f32.mrf.mxu0
  %v176 = vadd.f32 0.0, %v175
  %177 = vmatmul.f32.gmra.mxu0 %v66
  %v178 = vpop.f32.mrf.mxu0
  %v179 = vadd.f32 0.0, %v178
  %180 = vmatmul.f32.gmra.mxu0 %v69
  %v181 = vpop.f32.mrf.mxu0
  %v182 = vadd.f32 0.0, %v181
  %183 = vmatmul.f32.gmra.mxu0 %v72
  %v184 = vpop.f32.mrf.mxu0
  %v185 = vadd.f32 0.0, %v184
  %186 = vmatmul.f32.gmra.mxu0 %v75
  %v187 = vpop.f32.mrf.mxu0
  %v188 = vadd.f32 0.0, %v187
  %189 = vmatmul.f32.gmra.mxu0 %v78
  %v190 = vpop.f32.mrf.mxu0
  %v191 = vadd.f32 0.0, %v190
  %192 = vmatmul.f32.gmra.mxu0 %v81
  %v193 = vpop.f32.mrf.mxu0
  %v194 = vadd.f32 0.0, %v193
  %195 = vmatmul.f32.gmra.mxu0 %v84
  %v196 = vpop.f32.mrf.mxu0
  %v197 = vadd.f32 0.0, %v196
  %198 = vmatmul.f32.gmra.mxu0 %v87
  %v199 = vpop.f32.mrf.mxu0
  %v200 = vadd.f32 0.0, %v199
  %201 = vmatmul.f32.gmra.mxu0 %v90
  %v202 = vpop.f32.mrf.mxu0
  %v203 = vadd.f32 0.0, %v202
  %204 = vmatmul.f32.gmra.mxu0 %v93
  %v205 = vpop.f32.mrf.mxu0
  %v206 = vadd.f32 0.0, %v205
  %207 = vmatmul.f32.gmra.mxu0 %v96
  %v208 = vpop.f32.mrf.mxu0
  %v209 = vadd.f32 0.0, %v208
  %210 = vmatmul.f32.gmra.mxu0 %v99
  %v211 = vpop.f32.mrf.mxu0
  %v212 = vadd.f32 0.0, %v211
  %213 = vdwg.mxu0
  %v214 = vmul.f32 %v20, %v20
  %v215 = vmul.f32 %v21, %v21
  %v216 = vmul.f32 %v22, %v22
  %v217 = vmul.f32 %v23, %v23
  %v218 = vmul.f32 %v24, %v24
  %v219 = vmul.f32 %v25, %v25
  %v220 = vmul.f32 %v26, %v26
  %v221 = vmul.f32 %v27, %v27
  %v222 = vmul.f32 %v28, %v28
  %v223 = vmul.f32 %v29, %v29
  %v224 = vmul.f32 %v30, %v30
  %v225 = vmul.f32 %v31, %v31
  %v226 = vmul.f32 %v32, %v32
  %v227 = vmul.f32 %v33, %v33
  %v228 = vmul.f32 %v34, %v34
  %v229 = vmul.f32 %v35, %v35
  %v230 = vsel %vm52, %v214, 0.0
  %231 = vadd.xlane.f32.xlu0 %v230
  %v232 = vpop.xlane.xlu0 %231
  %v233 = vsel %vm52, %v215, 0.0
  %234 = vadd.xlane.f32.xlu0 %v233
  %v235 = vpop.xlane.xlu0 %234
  %v236 = vsel %vm52, %v216, 0.0
  %237 = vadd.xlane.f32.xlu0 %v236
  %v238 = vpop.xlane.xlu0 %237
  %v239 = vsel %vm52, %v217, 0.0
  %240 = vadd.xlane.f32.xlu0 %v239
  %v241 = vpop.xlane.xlu0 %240
  %v242 = vsel %vm52, %v218, 0.0
  %243 = vadd.xlane.f32.xlu0 %v242
  %v244 = vpop.xlane.xlu0 %243
  %v245 = vsel %vm52, %v219, 0.0
  %246 = vadd.xlane.f32.xlu0 %v245
  %v247 = vpop.xlane.xlu0 %246
  %v248 = vsel %vm52, %v220, 0.0
  %249 = vadd.xlane.f32.xlu0 %v248
  %v250 = vpop.xlane.xlu0 %249
  %v251 = vsel %vm52, %v221, 0.0
  %252 = vadd.xlane.f32.xlu0 %v251
  %v253 = vpop.xlane.xlu0 %252
  %v254 = vsel %vm52, %v222, 0.0
  %255 = vadd.xlane.f32.xlu0 %v254
  %v256 = vpop.xlane.xlu0 %255
  %v257 = vsel %vm52, %v223, 0.0
  %258 = vadd.xlane.f32.xlu0 %v257
  %v259 = vpop.xlane.xlu0 %258
  %v260 = vsel %vm52, %v224, 0.0
  %261 = vadd.xlane.f32.xlu0 %v260
  %v262 = vpop.xlane.xlu0 %261
  %v263 = vsel %vm52, %v225, 0.0
  %264 = vadd.xlane.f32.xlu0 %v263
  %v265 = vpop.xlane.xlu0 %264
  %v266 = vsel %vm52, %v226, 0.0
  %267 = vadd.xlane.f32.xlu0 %v266
  %v268 = vpop.xlane.xlu0 %267
  %v269 = vsel %vm52, %v227, 0.0
  %270 = vadd.xlane.f32.xlu0 %v269
  %v271 = vpop.xlane.xlu0 %270
  %v272 = vsel %vm52, %v228, 0.0
  %273 = vadd.xlane.f32.xlu0 %v272
  %v274 = vpop.xlane.xlu0 %273
  %v275 = vsel %vm52, %v229, 0.0
  %276 = vadd.xlane.f32.xlu0 %v275
  %v277 = vpop.xlane.xlu0 %276
  %v278 = vld [vmem:[%s4] sm:$0x1]
  %v280 = vperm.slane %v278, 0
  %v282 = vadd.f32 %v232, %v280
  %v283 = vadd.f32 %v235, %v280
  %v284 = vadd.f32 %v238, %v280
  %v285 = vadd.f32 %v241, %v280
  %v286 = vadd.f32 %v244, %v280
  %v287 = vadd.f32 %v247, %v280
  %v288 = vadd.f32 %v250, %v280
  %v289 = vadd.f32 %v253, %v280
  %v290 = vadd.f32 %v256, %v280
  %v291 = vadd.f32 %v259, %v280
  %v292 = vadd.f32 %v262, %v280
  %v293 = vadd.f32 %v265, %v280
  %v294 = vadd.f32 %v268, %v280
  %v295 = vadd.f32 %v271, %v280
  %v296 = vadd.f32 %v274, %v280
  %v297 = vadd.f32 %v277, %v280
  %v298 = vmul.f32 %v167, 2.0
  %v299 = vmul.f32 %v170, 2.0
  %v300 = vmul.f32 %v173, 2.0
  %v301 = vmul.f32 %v176, 2.0
  %v302 = vmul.f32 %v179, 2.0
  %v303 = vmul.f32 %v182, 2.0
  %v304 = vmul.f32 %v185, 2.0
  %v305 = vmul.f32 %v188, 2.0
  %v306 = vmul.f32 %v191, 2.0
  %v307 = vmul.f32 %v194, 2.0
  %v308 = vmul.f32 %v197, 2.0
  %v309 = vmul.f32 %v200, 2.0
  %v310 = vmul.f32 %v203, 2.0
  %v311 = vmul.f32 %v206, 2.0
  %v312 = vmul.f32 %v209, 2.0
  %v313 = vmul.f32 %v212, 2.0
  %v314 = vsub.f32 %v282, %v298
  %v315 = vsub.f32 %v283, %v299
  %v316 = vsub.f32 %v284, %v300
  %v317 = vsub.f32 %v285, %v301
  %v318 = vsub.f32 %v286, %v302
  %v319 = vsub.f32 %v287, %v303
  %v320 = vsub.f32 %v288, %v304
  %v321 = vsub.f32 %v289, %v305
  %v322 = vsub.f32 %v290, %v306
  %v323 = vsub.f32 %v291, %v307
  %v324 = vsub.f32 %v292, %v308
  %v325 = vsub.f32 %v293, %v309
  %v326 = vsub.f32 %v294, %v310
  %v327 = vsub.f32 %v295, %v311
  %v328 = vsub.f32 %v296, %v312
  %v329 = vsub.f32 %v297, %v313
  %v330 = vmax.f32 %v314, 1e-12
  %v331 = vmax.f32 %v315, 1e-12
  %v332 = vmax.f32 %v316, 1e-12
  %v333 = vmax.f32 %v317, 1e-12
  %v334 = vmax.f32 %v318, 1e-12
  %v335 = vmax.f32 %v319, 1e-12
  %v336 = vmax.f32 %v320, 1e-12
  %v337 = vmax.f32 %v321, 1e-12
  %v338 = vmax.f32 %v322, 1e-12
  %v339 = vmax.f32 %v323, 1e-12
  %v340 = vmax.f32 %v324, 1e-12
  %v341 = vmax.f32 %v325, 1e-12
  %v342 = vmax.f32 %v326, 1e-12
  %v343 = vmax.f32 %v327, 1e-12
  %v344 = vmax.f32 %v328, 1e-12
  %v345 = vmax.f32 %v329, 1e-12
  %v346 = vrsqrt.pop %v330
  %v347 = vmul.f32 %v346, %v330
  %v348 = vmul.f32 %v347, %v346
  %v349 = vmul.f32 0.5, %v348
  %v350 = vsub.f32 1.5, %v349
  %v351 = vmul.f32 %v346, %v350
  %v352 = vmul.f32 %v330, %v351
  %vm353 = vcmp.eq.f32.partialorder %v330, inf
  %v354 = vsel %vm353, %v330, %v352
  %vm355 = vcmp.eq.f32.partialorder %v330, 0.0
  %v356 = vand.u32 %v330, 2147483648
  %v357 = vsel %vm355, %v356, %v354
  %v358 = vrsqrt.pop %v331
  %v359 = vmul.f32 %v358, %v331
  %v360 = vmul.f32 %v359, %v358
  %v361 = vmul.f32 0.5, %v360
  %v362 = vsub.f32 1.5, %v361
  %v363 = vmul.f32 %v358, %v362
  %v364 = vmul.f32 %v331, %v363
  %vm365 = vcmp.eq.f32.partialorder %v331, inf
  %v366 = vsel %vm365, %v331, %v364
  %vm367 = vcmp.eq.f32.partialorder %v331, 0.0
  %v368 = vand.u32 %v331, 2147483648
  %v369 = vsel %vm367, %v368, %v366
  %v370 = vrsqrt.pop %v332
  %v371 = vmul.f32 %v370, %v332
  %v372 = vmul.f32 %v371, %v370
  %v373 = vmul.f32 0.5, %v372
  %v374 = vsub.f32 1.5, %v373
  %v375 = vmul.f32 %v370, %v374
  %v376 = vmul.f32 %v332, %v375
  %vm377 = vcmp.eq.f32.partialorder %v332, inf
  %v378 = vsel %vm377, %v332, %v376
  %vm379 = vcmp.eq.f32.partialorder %v332, 0.0
  %v380 = vand.u32 %v332, 2147483648
  %v381 = vsel %vm379, %v380, %v378
  %v382 = vrsqrt.pop %v333
  %v383 = vmul.f32 %v382, %v333
  %v384 = vmul.f32 %v383, %v382
  %v385 = vmul.f32 0.5, %v384
  %v386 = vsub.f32 1.5, %v385
  %v387 = vmul.f32 %v382, %v386
  %v388 = vmul.f32 %v333, %v387
  %vm389 = vcmp.eq.f32.partialorder %v333, inf
  %v390 = vsel %vm389, %v333, %v388
  %vm391 = vcmp.eq.f32.partialorder %v333, 0.0
  %v392 = vand.u32 %v333, 2147483648
  %v393 = vsel %vm391, %v392, %v390
  %v394 = vrsqrt.pop %v334
  %v395 = vmul.f32 %v394, %v334
  %v396 = vmul.f32 %v395, %v394
  %v397 = vmul.f32 0.5, %v396
  %v398 = vsub.f32 1.5, %v397
  %v399 = vmul.f32 %v394, %v398
  %v400 = vmul.f32 %v334, %v399
  %vm401 = vcmp.eq.f32.partialorder %v334, inf
  %v402 = vsel %vm401, %v334, %v400
  %vm403 = vcmp.eq.f32.partialorder %v334, 0.0
  %v404 = vand.u32 %v334, 2147483648
  %v405 = vsel %vm403, %v404, %v402
  %v406 = vrsqrt.pop %v335
  %v407 = vmul.f32 %v406, %v335
  %v408 = vmul.f32 %v407, %v406
  %v409 = vmul.f32 0.5, %v408
  %v410 = vsub.f32 1.5, %v409
  %v411 = vmul.f32 %v406, %v410
  %v412 = vmul.f32 %v335, %v411
  %vm413 = vcmp.eq.f32.partialorder %v335, inf
  %v414 = vsel %vm413, %v335, %v412
  %vm415 = vcmp.eq.f32.partialorder %v335, 0.0
  %v416 = vand.u32 %v335, 2147483648
  %v417 = vsel %vm415, %v416, %v414
  %v418 = vrsqrt.pop %v336
  %v419 = vmul.f32 %v418, %v336
  %v420 = vmul.f32 %v419, %v418
  %v421 = vmul.f32 0.5, %v420
  %v422 = vsub.f32 1.5, %v421
  %v423 = vmul.f32 %v418, %v422
  %v424 = vmul.f32 %v336, %v423
  %vm425 = vcmp.eq.f32.partialorder %v336, inf
  %v426 = vsel %vm425, %v336, %v424
  %vm427 = vcmp.eq.f32.partialorder %v336, 0.0
  %v428 = vand.u32 %v336, 2147483648
  %v429 = vsel %vm427, %v428, %v426
  %v430 = vrsqrt.pop %v337
  %v431 = vmul.f32 %v430, %v337
  %v432 = vmul.f32 %v431, %v430
  %v433 = vmul.f32 0.5, %v432
  %v434 = vsub.f32 1.5, %v433
  %v435 = vmul.f32 %v430, %v434
  %v436 = vmul.f32 %v337, %v435
  %vm437 = vcmp.eq.f32.partialorder %v337, inf
  %v438 = vsel %vm437, %v337, %v436
  %vm439 = vcmp.eq.f32.partialorder %v337, 0.0
  %v440 = vand.u32 %v337, 2147483648
  %v441 = vsel %vm439, %v440, %v438
  %v442 = vrsqrt.pop %v338
  %v443 = vmul.f32 %v442, %v338
  %v444 = vmul.f32 %v443, %v442
  %v445 = vmul.f32 0.5, %v444
  %v446 = vsub.f32 1.5, %v445
  %v447 = vmul.f32 %v442, %v446
  %v448 = vmul.f32 %v338, %v447
  %vm449 = vcmp.eq.f32.partialorder %v338, inf
  %v450 = vsel %vm449, %v338, %v448
  %vm451 = vcmp.eq.f32.partialorder %v338, 0.0
  %v452 = vand.u32 %v338, 2147483648
  %v453 = vsel %vm451, %v452, %v450
  %v454 = vrsqrt.pop %v339
  %v455 = vmul.f32 %v454, %v339
  %v456 = vmul.f32 %v455, %v454
  %v457 = vmul.f32 0.5, %v456
  %v458 = vsub.f32 1.5, %v457
  %v459 = vmul.f32 %v454, %v458
  %v460 = vmul.f32 %v339, %v459
  %vm461 = vcmp.eq.f32.partialorder %v339, inf
  %v462 = vsel %vm461, %v339, %v460
  %vm463 = vcmp.eq.f32.partialorder %v339, 0.0
  %v464 = vand.u32 %v339, 2147483648
  %v465 = vsel %vm463, %v464, %v462
  %v466 = vrsqrt.pop %v340
  %v467 = vmul.f32 %v466, %v340
  %v468 = vmul.f32 %v467, %v466
  %v469 = vmul.f32 0.5, %v468
  %v470 = vsub.f32 1.5, %v469
  %v471 = vmul.f32 %v466, %v470
  %v472 = vmul.f32 %v340, %v471
  %vm473 = vcmp.eq.f32.partialorder %v340, inf
  %v474 = vsel %vm473, %v340, %v472
  %vm475 = vcmp.eq.f32.partialorder %v340, 0.0
  %v476 = vand.u32 %v340, 2147483648
  %v477 = vsel %vm475, %v476, %v474
  %v478 = vrsqrt.pop %v341
  %v479 = vmul.f32 %v478, %v341
  %v480 = vmul.f32 %v479, %v478
  %v481 = vmul.f32 0.5, %v480
  %v482 = vsub.f32 1.5, %v481
  %v483 = vmul.f32 %v478, %v482
  %v484 = vmul.f32 %v341, %v483
  %vm485 = vcmp.eq.f32.partialorder %v341, inf
  %v486 = vsel %vm485, %v341, %v484
  %vm487 = vcmp.eq.f32.partialorder %v341, 0.0
  %v488 = vand.u32 %v341, 2147483648
  %v489 = vsel %vm487, %v488, %v486
  %v490 = vrsqrt.pop %v342
  %v491 = vmul.f32 %v490, %v342
  %v492 = vmul.f32 %v491, %v490
  %v493 = vmul.f32 0.5, %v492
  %v494 = vsub.f32 1.5, %v493
  %v495 = vmul.f32 %v490, %v494
  %v496 = vmul.f32 %v342, %v495
  %vm497 = vcmp.eq.f32.partialorder %v342, inf
  %v498 = vsel %vm497, %v342, %v496
  %vm499 = vcmp.eq.f32.partialorder %v342, 0.0
  %v500 = vand.u32 %v342, 2147483648
  %v501 = vsel %vm499, %v500, %v498
  %v502 = vrsqrt.pop %v343
  %v503 = vmul.f32 %v502, %v343
  %v504 = vmul.f32 %v503, %v502
  %v505 = vmul.f32 0.5, %v504
  %v506 = vsub.f32 1.5, %v505
  %v507 = vmul.f32 %v502, %v506
  %v508 = vmul.f32 %v343, %v507
  %vm509 = vcmp.eq.f32.partialorder %v343, inf
  %v510 = vsel %vm509, %v343, %v508
  %vm511 = vcmp.eq.f32.partialorder %v343, 0.0
  %v512 = vand.u32 %v343, 2147483648
  %v513 = vsel %vm511, %v512, %v510
  %v514 = vrsqrt.pop %v344
  %v515 = vmul.f32 %v514, %v344
  %v516 = vmul.f32 %v515, %v514
  %v517 = vmul.f32 0.5, %v516
  %v518 = vsub.f32 1.5, %v517
  %v519 = vmul.f32 %v514, %v518
  %v520 = vmul.f32 %v344, %v519
  %vm521 = vcmp.eq.f32.partialorder %v344, inf
  %v522 = vsel %vm521, %v344, %v520
  %vm523 = vcmp.eq.f32.partialorder %v344, 0.0
  %v524 = vand.u32 %v344, 2147483648
  %v525 = vsel %vm523, %v524, %v522
  %v526 = vrsqrt.pop %v345
  %v527 = vmul.f32 %v526, %v345
  %v528 = vmul.f32 %v527, %v526
  %v529 = vmul.f32 0.5, %v528
  %v530 = vsub.f32 1.5, %v529
  %v531 = vmul.f32 %v526, %v530
  %v532 = vmul.f32 %v345, %v531
  %vm533 = vcmp.eq.f32.partialorder %v345, inf
  %v534 = vsel %vm533, %v345, %v532
  %vm535 = vcmp.eq.f32.partialorder %v345, 0.0
  %v536 = vand.u32 %v345, 2147483648
  %v537 = vsel %vm535, %v536, %v534
  %s538 = smul.u32 0, 128
  %v539 = vlaneseq
  %v540 = vshrl.u32 %v539, 7
  %v541 = vadd.s32 %v540, 8
  %v542 = vadd.s32 %v540, 16
  %v543 = vadd.s32 %v540, 24
  %v544 = vadd.s32 %v540, 32
  %v545 = vadd.s32 %v540, 40
  %v546 = vadd.s32 %v540, 48
  %v547 = vadd.s32 %v540, 56
  %v548 = vadd.s32 %v540, 64
  %v549 = vadd.s32 %v540, 72
  %v550 = vadd.s32 %v540, 80
  %v551 = vadd.s32 %v540, 88
  %v552 = vadd.s32 %v540, 96
  %v553 = vadd.s32 %v540, 104
  %v554 = vadd.s32 %v540, 112
  %v555 = vadd.s32 %v540, 120
  %v556 = vstv %s538
  %v557 = vadd.s32 %v556, %v540
  %v558 = vadd.s32 %v556, %v541
  %v559 = vadd.s32 %v556, %v542
  %v560 = vadd.s32 %v556, %v543
  %v561 = vadd.s32 %v556, %v544
  %v562 = vadd.s32 %v556, %v545
  %v563 = vadd.s32 %v556, %v546
  %v564 = vadd.s32 %v556, %v547
  %v565 = vadd.s32 %v556, %v548
  %v566 = vadd.s32 %v556, %v549
  %v567 = vadd.s32 %v556, %v550
  %v568 = vadd.s32 %v556, %v551
  %v569 = vadd.s32 %v556, %v552
  %v570 = vadd.s32 %v556, %v553
  %v571 = vadd.s32 %v556, %v554
  %v572 = vadd.s32 %v556, %v555
  %v573 = vlaneseq
  %v574 = vand.u32 %v573, 127
  %vm575 = vcmp.eq.s32.totalorder %v574, %v557
  %vm576 = vcmp.eq.s32.totalorder %v574, %v558
  %vm577 = vcmp.eq.s32.totalorder %v574, %v559
  %vm578 = vcmp.eq.s32.totalorder %v574, %v560
  %vm579 = vcmp.eq.s32.totalorder %v574, %v561
  %vm580 = vcmp.eq.s32.totalorder %v574, %v562
  %vm581 = vcmp.eq.s32.totalorder %v574, %v563
  %vm582 = vcmp.eq.s32.totalorder %v574, %v564
  %vm583 = vcmp.eq.s32.totalorder %v574, %v565
  %vm584 = vcmp.eq.s32.totalorder %v574, %v566
  %vm585 = vcmp.eq.s32.totalorder %v574, %v567
  %vm586 = vcmp.eq.s32.totalorder %v574, %v568
  %vm587 = vcmp.eq.s32.totalorder %v574, %v569
  %vm588 = vcmp.eq.s32.totalorder %v574, %v570
  %vm589 = vcmp.eq.s32.totalorder %v574, %v571
  %vm590 = vcmp.eq.s32.totalorder %v574, %v572
  %vm591 = vcmp.lt.s32.totalorder %v574, 8
  %vm592 = vcmp.lt.s32.totalorder %v557, 8
  %vm593 = vcmp.lt.s32.totalorder %v558, 8
  %vm594 = vcmp.lt.s32.totalorder %v559, 8
  %vm595 = vcmp.lt.s32.totalorder %v560, 8
  %vm596 = vcmp.lt.s32.totalorder %v561, 8
  %vm597 = vcmp.lt.s32.totalorder %v562, 8
  %vm598 = vcmp.lt.s32.totalorder %v563, 8
  %vm599 = vcmp.lt.s32.totalorder %v564, 8
  %vm600 = vcmp.lt.s32.totalorder %v565, 8
  %vm601 = vcmp.lt.s32.totalorder %v566, 8
  %vm602 = vcmp.lt.s32.totalorder %v567, 8
  %vm603 = vcmp.lt.s32.totalorder %v568, 8
  %vm604 = vcmp.lt.s32.totalorder %v569, 8
  %vm605 = vcmp.lt.s32.totalorder %v570, 8
  %vm606 = vcmp.lt.s32.totalorder %v571, 8
  %vm607 = vcmp.lt.s32.totalorder %v572, 8
  %v608 = vld [vmem:[%s2] sm:$0xff]
  %v609 = vld [vmem:[%s2 + $0x8] sm:$0xff]
  %v610 = vld [vmem:[%s2 + $0x10] sm:$0xff]
  %v611 = vld [vmem:[%s2 + $0x18] sm:$0xff]
  %v612 = vld [vmem:[%s2 + $0x20] sm:$0xff]
  %v613 = vld [vmem:[%s2 + $0x28] sm:$0xff]
  %v614 = vld [vmem:[%s2 + $0x30] sm:$0xff]
  %v615 = vld [vmem:[%s2 + $0x38] sm:$0xff]
  %v616 = vld [vmem:[%s2 + $0x40] sm:$0xff]
  %v617 = vld [vmem:[%s2 + $0x48] sm:$0xff]
  %v618 = vld [vmem:[%s2 + $0x50] sm:$0xff]
  %v619 = vld [vmem:[%s2 + $0x58] sm:$0xff]
  %v620 = vld [vmem:[%s2 + $0x60] sm:$0xff]
  %v621 = vld [vmem:[%s2 + $0x68] sm:$0xff]
  %v622 = vld [vmem:[%s2 + $0x70] sm:$0xff]
  %v623 = vld [vmem:[%s2 + $0x78] sm:$0xff]
  %v624 = vld [vmem:[%s3] sm:$0x1]
  %625 = vset.pattern.permute.xlu0 0
  %626 = vperm.xlu0 %625, %v608
  %v627 = vpop.permute.xlu0 %626
  %628 = vset.pattern.permute.xlu0 0
  %629 = vperm.xlu0 %628, %v609
  %v630 = vpop.permute.xlu0 %629
  %631 = vset.pattern.permute.xlu0 0
  %632 = vperm.xlu0 %631, %v610
  %v633 = vpop.permute.xlu0 %632
  %634 = vset.pattern.permute.xlu0 0
  %635 = vperm.xlu0 %634, %v611
  %v636 = vpop.permute.xlu0 %635
  %637 = vset.pattern.permute.xlu0 0
  %638 = vperm.xlu0 %637, %v612
  %v639 = vpop.permute.xlu0 %638
  %640 = vset.pattern.permute.xlu0 0
  %641 = vperm.xlu0 %640, %v613
  %v642 = vpop.permute.xlu0 %641
  %643 = vset.pattern.permute.xlu0 0
  %644 = vperm.xlu0 %643, %v614
  %v645 = vpop.permute.xlu0 %644
  %646 = vset.pattern.permute.xlu0 0
  %647 = vperm.xlu0 %646, %v615
  %v648 = vpop.permute.xlu0 %647
  %649 = vset.pattern.permute.xlu0 0
  %650 = vperm.xlu0 %649, %v616
  %v651 = vpop.permute.xlu0 %650
  %652 = vset.pattern.permute.xlu0 0
  %653 = vperm.xlu0 %652, %v617
  %v654 = vpop.permute.xlu0 %653
  %655 = vset.pattern.permute.xlu0 0
  %656 = vperm.xlu0 %655, %v618
  %v657 = vpop.permute.xlu0 %656
  %658 = vset.pattern.permute.xlu0 0
  %659 = vperm.xlu0 %658, %v619
  %v660 = vpop.permute.xlu0 %659
  %661 = vset.pattern.permute.xlu0 0
  %662 = vperm.xlu0 %661, %v620
  %v663 = vpop.permute.xlu0 %662
  %664 = vset.pattern.permute.xlu0 0
  %665 = vperm.xlu0 %664, %v621
  %v666 = vpop.permute.xlu0 %665
  %667 = vset.pattern.permute.xlu0 0
  %668 = vperm.xlu0 %667, %v622
  %v669 = vpop.permute.xlu0 %668
  %670 = vset.pattern.permute.xlu0 0
  %671 = vperm.xlu0 %670, %v623
  %v672 = vpop.permute.xlu0 %671
  %v673 = vperm.slane %v624, 0
  %vm674 = vcmp.eq.s32.totalorder %v627, %v673
  %vm675 = vcmp.eq.s32.totalorder %v630, %v673
  %vm676 = vcmp.eq.s32.totalorder %v633, %v673
  %vm677 = vcmp.eq.s32.totalorder %v636, %v673
  %vm678 = vcmp.eq.s32.totalorder %v639, %v673
  %vm679 = vcmp.eq.s32.totalorder %v642, %v673
  %vm680 = vcmp.eq.s32.totalorder %v645, %v673
  %vm681 = vcmp.eq.s32.totalorder %v648, %v673
  %vm682 = vcmp.eq.s32.totalorder %v651, %v673
  %vm683 = vcmp.eq.s32.totalorder %v654, %v673
  %vm684 = vcmp.eq.s32.totalorder %v657, %v673
  %vm685 = vcmp.eq.s32.totalorder %v660, %v673
  %vm686 = vcmp.eq.s32.totalorder %v663, %v673
  %vm687 = vcmp.eq.s32.totalorder %v666, %v673
  %vm688 = vcmp.eq.s32.totalorder %v669, %v673
  %vm689 = vcmp.eq.s32.totalorder %v672, %v673
  %vm690 = vmxor %vm575, 1
  %vm691 = vmxor %vm576, 1
  %vm692 = vmxor %vm577, 1
  %vm693 = vmxor %vm578, 1
  %vm694 = vmxor %vm579, 1
  %vm695 = vmxor %vm580, 1
  %vm696 = vmxor %vm581, 1
  %vm697 = vmxor %vm582, 1
  %vm698 = vmxor %vm583, 1
  %vm699 = vmxor %vm584, 1
  %vm700 = vmxor %vm585, 1
  %vm701 = vmxor %vm586, 1
  %vm702 = vmxor %vm587, 1
  %vm703 = vmxor %vm588, 1
  %vm704 = vmxor %vm589, 1
  %vm705 = vmxor %vm590, 1
  %vm706 = vmand %vm674, %vm690
  %vm707 = vmand %vm675, %vm691
  %vm708 = vmand %vm676, %vm692
  %vm709 = vmand %vm677, %vm693
  %vm710 = vmand %vm678, %vm694
  %vm711 = vmand %vm679, %vm695
  %vm712 = vmand %vm680, %vm696
  %vm713 = vmand %vm681, %vm697
  %vm714 = vmand %vm682, %vm698
  %vm715 = vmand %vm683, %vm699
  %vm716 = vmand %vm684, %vm700
  %vm717 = vmand %vm685, %vm701
  %vm718 = vmand %vm686, %vm702
  %vm719 = vmand %vm687, %vm703
  %vm720 = vmand %vm688, %vm704
  %vm721 = vmand %vm689, %vm705
  %vm722 = vmand %vm706, %vm591
  %vm723 = vmand %vm707, %vm591
  %vm724 = vmand %vm708, %vm591
  %vm725 = vmand %vm709, %vm591
  %vm726 = vmand %vm710, %vm591
  %vm727 = vmand %vm711, %vm591
  %vm728 = vmand %vm712, %vm591
  %vm729 = vmand %vm713, %vm591
  %vm730 = vmand %vm714, %vm591
  %vm731 = vmand %vm715, %vm591
  %vm732 = vmand %vm716, %vm591
  %vm733 = vmand %vm717, %vm591
  %vm734 = vmand %vm718, %vm591
  %vm735 = vmand %vm719, %vm591
  %vm736 = vmand %vm720, %vm591
  %vm737 = vmand %vm721, %vm591
  %vm738 = vmxor %vm674, 1
  %vm739 = vmxor %vm675, 1
  %vm740 = vmxor %vm676, 1
  %vm741 = vmxor %vm677, 1
  %vm742 = vmxor %vm678, 1
  %vm743 = vmxor %vm679, 1
  %vm744 = vmxor %vm680, 1
  %vm745 = vmxor %vm681, 1
  %vm746 = vmxor %vm682, 1
  %vm747 = vmxor %vm683, 1
  %vm748 = vmxor %vm684, 1
  %vm749 = vmxor %vm685, 1
  %vm750 = vmxor %vm686, 1
  %vm751 = vmxor %vm687, 1
  %vm752 = vmxor %vm688, 1
  %vm753 = vmxor %vm689, 1
  %vm754 = vmand %vm738, %vm591
  %vm755 = vmand %vm739, %vm591
  %vm756 = vmand %vm740, %vm591
  %vm757 = vmand %vm741, %vm591
  %vm758 = vmand %vm742, %vm591
  %vm759 = vmand %vm743, %vm591
  %vm760 = vmand %vm744, %vm591
  %vm761 = vmand %vm745, %vm591
  %vm762 = vmand %vm746, %vm591
  %vm763 = vmand %vm747, %vm591
  %vm764 = vmand %vm748, %vm591
  %vm765 = vmand %vm749, %vm591
  %vm766 = vmand %vm750, %vm591
  %vm767 = vmand %vm751, %vm591
  %vm768 = vmand %vm752, %vm591
  %vm769 = vmand %vm753, %vm591
  %v770 = vsel %vm722, %v357, 3e+38
  %v771 = vsel %vm723, %v369, 3e+38
  %v772 = vsel %vm724, %v381, 3e+38
  %v773 = vsel %vm725, %v393, 3e+38
  %v774 = vsel %vm726, %v405, 3e+38
  %v775 = vsel %vm727, %v417, 3e+38
  %v776 = vsel %vm728, %v429, 3e+38
  %v777 = vsel %vm729, %v441, 3e+38
  %v778 = vsel %vm730, %v453, 3e+38
  %v779 = vsel %vm731, %v465, 3e+38
  %v780 = vsel %vm732, %v477, 3e+38
  %v781 = vsel %vm733, %v489, 3e+38
  %v782 = vsel %vm734, %v501, 3e+38
  %v783 = vsel %vm735, %v513, 3e+38
  %v784 = vsel %vm736, %v525, 3e+38
  %v785 = vsel %vm737, %v537, 3e+38
  %786 = vmin.xlane.f32.xlu0 %v770
  %v787 = vpop.xlane.xlu0 %786
  %788 = vmin.xlane.f32.xlu0 %v771
  %v789 = vpop.xlane.xlu0 %788
  %790 = vmin.xlane.f32.xlu0 %v772
  %v791 = vpop.xlane.xlu0 %790
  %792 = vmin.xlane.f32.xlu0 %v773
  %v793 = vpop.xlane.xlu0 %792
  %794 = vmin.xlane.f32.xlu0 %v774
  %v795 = vpop.xlane.xlu0 %794
  %796 = vmin.xlane.f32.xlu0 %v775
  %v797 = vpop.xlane.xlu0 %796
  %798 = vmin.xlane.f32.xlu0 %v776
  %v799 = vpop.xlane.xlu0 %798
  %800 = vmin.xlane.f32.xlu0 %v777
  %v801 = vpop.xlane.xlu0 %800
  %802 = vmin.xlane.f32.xlu0 %v778
  %v803 = vpop.xlane.xlu0 %802
  %804 = vmin.xlane.f32.xlu0 %v779
  %v805 = vpop.xlane.xlu0 %804
  %806 = vmin.xlane.f32.xlu0 %v780
  %v807 = vpop.xlane.xlu0 %806
  %808 = vmin.xlane.f32.xlu0 %v781
  %v809 = vpop.xlane.xlu0 %808
  %810 = vmin.xlane.f32.xlu0 %v782
  %v811 = vpop.xlane.xlu0 %810
  %812 = vmin.xlane.f32.xlu0 %v783
  %v813 = vpop.xlane.xlu0 %812
  %814 = vmin.xlane.f32.xlu0 %v784
  %v815 = vpop.xlane.xlu0 %814
  %816 = vmin.xlane.f32.xlu0 %v785
  %v817 = vpop.xlane.xlu0 %816
  %v818 = vadd.f32 %v787, 0.1
  %v819 = vadd.f32 %v789, 0.1
  %v820 = vadd.f32 %v791, 0.1
  %v821 = vadd.f32 %v793, 0.1
  %v822 = vadd.f32 %v795, 0.1
  %v823 = vadd.f32 %v797, 0.1
  %v824 = vadd.f32 %v799, 0.1
  %v825 = vadd.f32 %v801, 0.1
  %v826 = vadd.f32 %v803, 0.1
  %v827 = vadd.f32 %v805, 0.1
  %v828 = vadd.f32 %v807, 0.1
  %v829 = vadd.f32 %v809, 0.1
  %v830 = vadd.f32 %v811, 0.1
  %v831 = vadd.f32 %v813, 0.1
  %v832 = vadd.f32 %v815, 0.1
  %v833 = vadd.f32 %v817, 0.1
  %vm834 = vcmp.lt.f32.partialorder %v357, %v818
  %vm835 = vcmp.lt.f32.partialorder %v369, %v819
  %vm836 = vcmp.lt.f32.partialorder %v381, %v820
  %vm837 = vcmp.lt.f32.partialorder %v393, %v821
  %vm838 = vcmp.lt.f32.partialorder %v405, %v822
  %vm839 = vcmp.lt.f32.partialorder %v417, %v823
  %vm840 = vcmp.lt.f32.partialorder %v429, %v824
  %vm841 = vcmp.lt.f32.partialorder %v441, %v825
  %vm842 = vcmp.lt.f32.partialorder %v453, %v826
  %vm843 = vcmp.lt.f32.partialorder %v465, %v827
  %vm844 = vcmp.lt.f32.partialorder %v477, %v828
  %vm845 = vcmp.lt.f32.partialorder %v489, %v829
  %vm846 = vcmp.lt.f32.partialorder %v501, %v830
  %vm847 = vcmp.lt.f32.partialorder %v513, %v831
  %vm848 = vcmp.lt.f32.partialorder %v525, %v832
  %vm849 = vcmp.lt.f32.partialorder %v537, %v833
  %vm850 = vmand %vm754, %vm834
  %vm851 = vmand %vm755, %vm835
  %vm852 = vmand %vm756, %vm836
  %vm853 = vmand %vm757, %vm837
  %vm854 = vmand %vm758, %vm838
  %vm855 = vmand %vm759, %vm839
  %vm856 = vmand %vm760, %vm840
  %vm857 = vmand %vm761, %vm841
  %vm858 = vmand %vm762, %vm842
  %vm859 = vmand %vm763, %vm843
  %vm860 = vmand %vm764, %vm844
  %vm861 = vmand %vm765, %vm845
  %vm862 = vmand %vm766, %vm846
  %vm863 = vmand %vm767, %vm847
  %vm864 = vmand %vm768, %vm848
  %vm865 = vmand %vm769, %vm849
  %v866 = vsel %vm850, 1, 0
  %v867 = vsel %vm851, 1, 0
  %v868 = vsel %vm852, 1, 0
  %v869 = vsel %vm853, 1, 0
  %v870 = vsel %vm854, 1, 0
  %v871 = vsel %vm855, 1, 0
  %v872 = vsel %vm856, 1, 0
  %v873 = vsel %vm857, 1, 0
  %v874 = vsel %vm858, 1, 0
  %v875 = vsel %vm859, 1, 0
  %v876 = vsel %vm860, 1, 0
  %v877 = vsel %vm861, 1, 0
  %v878 = vsel %vm862, 1, 0
  %v879 = vsel %vm863, 1, 0
  %v880 = vsel %vm864, 1, 0
  %v881 = vsel %vm865, 1, 0
  %v882 = vcvt.s32.f32 %v866
  %v883 = vcvt.s32.f32 %v867
  %v884 = vcvt.s32.f32 %v868
  %v885 = vcvt.s32.f32 %v869
  %v886 = vcvt.s32.f32 %v870
  %v887 = vcvt.s32.f32 %v871
  %v888 = vcvt.s32.f32 %v872
  %v889 = vcvt.s32.f32 %v873
  %v890 = vcvt.s32.f32 %v874
  %v891 = vcvt.s32.f32 %v875
  %v892 = vcvt.s32.f32 %v876
  %v893 = vcvt.s32.f32 %v877
  %v894 = vcvt.s32.f32 %v878
  %v895 = vcvt.s32.f32 %v879
  %v896 = vcvt.s32.f32 %v880
  %v897 = vcvt.s32.f32 %v881
  %898 = vadd.xlane.f32.xlu0 %v882
  %v899 = vpop.xlane.xlu0 %898
  %900 = vadd.xlane.f32.xlu0 %v883
  %v901 = vpop.xlane.xlu0 %900
  %902 = vadd.xlane.f32.xlu0 %v884
  %v903 = vpop.xlane.xlu0 %902
  %904 = vadd.xlane.f32.xlu0 %v885
  %v905 = vpop.xlane.xlu0 %904
  %906 = vadd.xlane.f32.xlu0 %v886
  %v907 = vpop.xlane.xlu0 %906
  %908 = vadd.xlane.f32.xlu0 %v887
  %v909 = vpop.xlane.xlu0 %908
  %910 = vadd.xlane.f32.xlu0 %v888
  %v911 = vpop.xlane.xlu0 %910
  %912 = vadd.xlane.f32.xlu0 %v889
  %v913 = vpop.xlane.xlu0 %912
  %914 = vadd.xlane.f32.xlu0 %v890
  %v915 = vpop.xlane.xlu0 %914
  %916 = vadd.xlane.f32.xlu0 %v891
  %v917 = vpop.xlane.xlu0 %916
  %918 = vadd.xlane.f32.xlu0 %v892
  %v919 = vpop.xlane.xlu0 %918
  %920 = vadd.xlane.f32.xlu0 %v893
  %v921 = vpop.xlane.xlu0 %920
  %922 = vadd.xlane.f32.xlu0 %v894
  %v923 = vpop.xlane.xlu0 %922
  %924 = vadd.xlane.f32.xlu0 %v895
  %v925 = vpop.xlane.xlu0 %924
  %926 = vadd.xlane.f32.xlu0 %v896
  %v927 = vpop.xlane.xlu0 %926
  %928 = vadd.xlane.f32.xlu0 %v897
  %v929 = vpop.xlane.xlu0 %928
  %v930 = vmul.f32 %v357, %v882
  %v931 = vmul.f32 %v369, %v883
  %v932 = vmul.f32 %v381, %v884
  %v933 = vmul.f32 %v393, %v885
  %v934 = vmul.f32 %v405, %v886
  %v935 = vmul.f32 %v417, %v887
  %v936 = vmul.f32 %v429, %v888
  %v937 = vmul.f32 %v441, %v889
  %v938 = vmul.f32 %v453, %v890
  %v939 = vmul.f32 %v465, %v891
  %v940 = vmul.f32 %v477, %v892
  %v941 = vmul.f32 %v489, %v893
  %v942 = vmul.f32 %v501, %v894
  %v943 = vmul.f32 %v513, %v895
  %v944 = vmul.f32 %v525, %v896
  %v945 = vmul.f32 %v537, %v897
  %946 = vadd.xlane.f32.xlu0 %v930
  %v947 = vpop.xlane.xlu0 %946
  %948 = vadd.xlane.f32.xlu0 %v931
  %v949 = vpop.xlane.xlu0 %948
  %950 = vadd.xlane.f32.xlu0 %v932
  %v951 = vpop.xlane.xlu0 %950
  %952 = vadd.xlane.f32.xlu0 %v933
  %v953 = vpop.xlane.xlu0 %952
  %954 = vadd.xlane.f32.xlu0 %v934
  %v955 = vpop.xlane.xlu0 %954
  %956 = vadd.xlane.f32.xlu0 %v935
  %v957 = vpop.xlane.xlu0 %956
  %958 = vadd.xlane.f32.xlu0 %v936
  %v959 = vpop.xlane.xlu0 %958
  %960 = vadd.xlane.f32.xlu0 %v937
  %v961 = vpop.xlane.xlu0 %960
  %962 = vadd.xlane.f32.xlu0 %v938
  %v963 = vpop.xlane.xlu0 %962
  %964 = vadd.xlane.f32.xlu0 %v939
  %v965 = vpop.xlane.xlu0 %964
  %966 = vadd.xlane.f32.xlu0 %v940
  %v967 = vpop.xlane.xlu0 %966
  %968 = vadd.xlane.f32.xlu0 %v941
  %v969 = vpop.xlane.xlu0 %968
  %970 = vadd.xlane.f32.xlu0 %v942
  %v971 = vpop.xlane.xlu0 %970
  %972 = vadd.xlane.f32.xlu0 %v943
  %v973 = vpop.xlane.xlu0 %972
  %974 = vadd.xlane.f32.xlu0 %v944
  %v975 = vpop.xlane.xlu0 %974
  %976 = vadd.xlane.f32.xlu0 %v945
  %v977 = vpop.xlane.xlu0 %976
  %v978 = vmax.f32 %v899, 1.0
  %v979 = vmax.f32 %v901, 1.0
  %v980 = vmax.f32 %v903, 1.0
  %v981 = vmax.f32 %v905, 1.0
  %v982 = vmax.f32 %v907, 1.0
  %v983 = vmax.f32 %v909, 1.0
  %v984 = vmax.f32 %v911, 1.0
  %v985 = vmax.f32 %v913, 1.0
  %v986 = vmax.f32 %v915, 1.0
  %v987 = vmax.f32 %v917, 1.0
  %v988 = vmax.f32 %v919, 1.0
  %v989 = vmax.f32 %v921, 1.0
  %v990 = vmax.f32 %v923, 1.0
  %v991 = vmax.f32 %v925, 1.0
  %v992 = vmax.f32 %v927, 1.0
  %v993 = vmax.f32 %v929, 1.0
  %v994 = vrcp.pop %v978
  %v995 = vrcp.pop %v979
  %v996 = vrcp.pop %v980
  %v997 = vrcp.pop %v981
  %v998 = vrcp.pop %v982
  %v999 = vrcp.pop %v983
  %v1000 = vrcp.pop %v984
  %v1001 = vrcp.pop %v985
  %v1002 = vrcp.pop %v986
  %v1003 = vrcp.pop %v987
  %v1004 = vrcp.pop %v988
  %v1005 = vrcp.pop %v989
  %v1006 = vrcp.pop %v990
  %v1007 = vrcp.pop %v991
  %v1008 = vrcp.pop %v992
  %v1009 = vrcp.pop %v993
  %v1010 = vmul.f32 %v947, %v994
  %v1011 = vmul.f32 %v949, %v995
  %v1012 = vmul.f32 %v951, %v996
  %v1013 = vmul.f32 %v953, %v997
  %v1014 = vmul.f32 %v955, %v998
  %v1015 = vmul.f32 %v957, %v999
  %v1016 = vmul.f32 %v959, %v1000
  %v1017 = vmul.f32 %v961, %v1001
  %v1018 = vmul.f32 %v963, %v1002
  %v1019 = vmul.f32 %v965, %v1003
  %v1020 = vmul.f32 %v967, %v1004
  %v1021 = vmul.f32 %v969, %v1005
  %v1022 = vmul.f32 %v971, %v1006
  %v1023 = vmul.f32 %v973, %v1007
  %v1024 = vmul.f32 %v975, %v1008
  %v1025 = vmul.f32 %v977, %v1009
  %vm1026 = vcmp.lt.f32.partialorder %v787, 1e+37
  %vm1027 = vcmp.lt.f32.partialorder %v789, 1e+37
  %vm1028 = vcmp.lt.f32.partialorder %v791, 1e+37
  %vm1029 = vcmp.lt.f32.partialorder %v793, 1e+37
  %vm1030 = vcmp.lt.f32.partialorder %v795, 1e+37
  %vm1031 = vcmp.lt.f32.partialorder %v797, 1e+37
  %vm1032 = vcmp.lt.f32.partialorder %v799, 1e+37
  %vm1033 = vcmp.lt.f32.partialorder %v801, 1e+37
  %vm1034 = vcmp.lt.f32.partialorder %v803, 1e+37
  %vm1035 = vcmp.lt.f32.partialorder %v805, 1e+37
  %vm1036 = vcmp.lt.f32.partialorder %v807, 1e+37
  %vm1037 = vcmp.lt.f32.partialorder %v809, 1e+37
  %vm1038 = vcmp.lt.f32.partialorder %v811, 1e+37
  %vm1039 = vcmp.lt.f32.partialorder %v813, 1e+37
  %vm1040 = vcmp.lt.f32.partialorder %v815, 1e+37
  %vm1041 = vcmp.lt.f32.partialorder %v817, 1e+37
  %vm1042 = vcmp.gt.f32.partialorder %v899, 0.0
  %vm1043 = vcmp.gt.f32.partialorder %v901, 0.0
  %vm1044 = vcmp.gt.f32.partialorder %v903, 0.0
  %vm1045 = vcmp.gt.f32.partialorder %v905, 0.0
  %vm1046 = vcmp.gt.f32.partialorder %v907, 0.0
  %vm1047 = vcmp.gt.f32.partialorder %v909, 0.0
  %vm1048 = vcmp.gt.f32.partialorder %v911, 0.0
  %vm1049 = vcmp.gt.f32.partialorder %v913, 0.0
  %vm1050 = vcmp.gt.f32.partialorder %v915, 0.0
  %vm1051 = vcmp.gt.f32.partialorder %v917, 0.0
  %vm1052 = vcmp.gt.f32.partialorder %v919, 0.0
  %vm1053 = vcmp.gt.f32.partialorder %v921, 0.0
  %vm1054 = vcmp.gt.f32.partialorder %v923, 0.0
  %vm1055 = vcmp.gt.f32.partialorder %v925, 0.0
  %vm1056 = vcmp.gt.f32.partialorder %v927, 0.0
  %vm1057 = vcmp.gt.f32.partialorder %v929, 0.0
  %vm1058 = vmand %vm1042, %vm592
  %vm1059 = vmand %vm1043, %vm593
  %vm1060 = vmand %vm1044, %vm594
  %vm1061 = vmand %vm1045, %vm595
  %vm1062 = vmand %vm1046, %vm596
  %vm1063 = vmand %vm1047, %vm597
  %vm1064 = vmand %vm1048, %vm598
  %vm1065 = vmand %vm1049, %vm599
  %vm1066 = vmand %vm1050, %vm600
  %vm1067 = vmand %vm1051, %vm601
  %vm1068 = vmand %vm1052, %vm602
  %vm1069 = vmand %vm1053, %vm603
  %vm1070 = vmand %vm1054, %vm604
  %vm1071 = vmand %vm1055, %vm605
  %vm1072 = vmand %vm1056, %vm606
  %vm1073 = vmand %vm1057, %vm607
  %vm1074 = vmand %vm1058, %vm1026
  %vm1075 = vmand %vm1059, %vm1027
  %vm1076 = vmand %vm1060, %vm1028
  %vm1077 = vmand %vm1061, %vm1029
  %vm1078 = vmand %vm1062, %vm1030
  %vm1079 = vmand %vm1063, %vm1031
  %vm1080 = vmand %vm1064, %vm1032
  %vm1081 = vmand %vm1065, %vm1033
  %vm1082 = vmand %vm1066, %vm1034
  %vm1083 = vmand %vm1067, %vm1035
  %vm1084 = vmand %vm1068, %vm1036
  %vm1085 = vmand %vm1069, %vm1037
  %vm1086 = vmand %vm1070, %vm1038
  %vm1087 = vmand %vm1071, %vm1039
  %vm1088 = vmand %vm1072, %vm1040
  %vm1089 = vmand %vm1073, %vm1041
  %v1090 = vsub.f32 %v787, %v1010
  %v1091 = vsub.f32 %v789, %v1011
  %v1092 = vsub.f32 %v791, %v1012
  %v1093 = vsub.f32 %v793, %v1013
  %v1094 = vsub.f32 %v795, %v1014
  %v1095 = vsub.f32 %v797, %v1015
  %v1096 = vsub.f32 %v799, %v1016
  %v1097 = vsub.f32 %v801, %v1017
  %v1098 = vsub.f32 %v803, %v1018
  %v1099 = vsub.f32 %v805, %v1019
  %v1100 = vsub.f32 %v807, %v1020
  %v1101 = vsub.f32 %v809, %v1021
  %v1102 = vsub.f32 %v811, %v1022
  %v1103 = vsub.f32 %v813, %v1023
  %v1104 = vsub.f32 %v815, %v1024
  %v1105 = vsub.f32 %v817, %v1025
  %v1106 = vadd.f32 %v1090, 0.1
  %v1107 = vadd.f32 %v1091, 0.1
  %v1108 = vadd.f32 %v1092, 0.1
  %v1109 = vadd.f32 %v1093, 0.1
  %v1110 = vadd.f32 %v1094, 0.1
  %v1111 = vadd.f32 %v1095, 0.1
  %v1112 = vadd.f32 %v1096, 0.1
  %v1113 = vadd.f32 %v1097, 0.1
  %v1114 = vadd.f32 %v1098, 0.1
  %v1115 = vadd.f32 %v1099, 0.1
  %v1116 = vadd.f32 %v1100, 0.1
  %v1117 = vadd.f32 %v1101, 0.1
  %v1118 = vadd.f32 %v1102, 0.1
  %v1119 = vadd.f32 %v1103, 0.1
  %v1120 = vadd.f32 %v1104, 0.1
  %v1121 = vadd.f32 %v1105, 0.1
  %v1122 = vsel %vm1074, %v1106, 0.0
  %v1123 = vsel %vm1075, %v1107, 0.0
  %v1124 = vsel %vm1076, %v1108, 0.0
  %v1125 = vsel %vm1077, %v1109, 0.0
  %v1126 = vsel %vm1078, %v1110, 0.0
  %v1127 = vsel %vm1079, %v1111, 0.0
  %v1128 = vsel %vm1080, %v1112, 0.0
  %v1129 = vsel %vm1081, %v1113, 0.0
  %v1130 = vsel %vm1082, %v1114, 0.0
  %v1131 = vsel %vm1083, %v1115, 0.0
  %v1132 = vsel %vm1084, %v1116, 0.0
  %v1133 = vsel %vm1085, %v1117, 0.0
  %v1134 = vsel %vm1086, %v1118, 0.0
  %v1135 = vsel %vm1087, %v1119, 0.0
  %v1136 = vsel %vm1088, %v1120, 0.0
  %v1137 = vsel %vm1089, %v1121, 0.0
  %vm1138 = vcmask 7168
  %1139 = vst.msk [vmem:[%s5] sm:$0xff] %vm1138, %v1122
  %1140 = vst.msk [vmem:[%s5 + $0x8] sm:$0xff] %vm1138, %v1123
  %1141 = vst.msk [vmem:[%s5 + $0x10] sm:$0xff] %vm1138, %v1124
  %1142 = vst.msk [vmem:[%s5 + $0x18] sm:$0xff] %vm1138, %v1125
  %1143 = vst.msk [vmem:[%s5 + $0x20] sm:$0xff] %vm1138, %v1126
  %1144 = vst.msk [vmem:[%s5 + $0x28] sm:$0xff] %vm1138, %v1127
  %1145 = vst.msk [vmem:[%s5 + $0x30] sm:$0xff] %vm1138, %v1128
  %1146 = vst.msk [vmem:[%s5 + $0x38] sm:$0xff] %vm1138, %v1129
  %1147 = vst.msk [vmem:[%s5 + $0x40] sm:$0xff] %vm1138, %v1130
  %1148 = vst.msk [vmem:[%s5 + $0x48] sm:$0xff] %vm1138, %v1131
  %1149 = vst.msk [vmem:[%s5 + $0x50] sm:$0xff] %vm1138, %v1132
  %1150 = vst.msk [vmem:[%s5 + $0x58] sm:$0xff] %vm1138, %v1133
  %1151 = vst.msk [vmem:[%s5 + $0x60] sm:$0xff] %vm1138, %v1134
  %1152 = vst.msk [vmem:[%s5 + $0x68] sm:$0xff] %vm1138, %v1135
  %1153 = vst.msk [vmem:[%s5 + $0x70] sm:$0xff] %vm1138, %v1136
  %1154 = vst.msk [vmem:[%s5 + $0x78] sm:$0xff] %vm1138, %v1137
  // Predicated region
  $region22: #{tpu_custom_call.1} parent=0 // pred_check
    _
  $region23: #{tpu_custom_call.1} parent=0 // pred_check_branch
    %1156 = sbr.rel (0) target = $region25
  $region24: #{tpu_custom_call.1} parent=0 // pred_region
    _
  $region25: #{tpu_custom_call.1} parent=0 // pred_fallthru
    _
  // Predicated region
  $region26: #{tpu_custom_call.1} parent=0 // pred_check
    _
  $region27: #{tpu_custom_call.1} parent=0 // pred_check_branch
    %1158 = sbr.rel (0) target = $region29
  $region28: #{tpu_custom_call.1} parent=0 // pred_region
    _
  $region29: #{tpu_custom_call.1} parent=0 // pred_fallthru
    _

</llo_original>
